<compile_context>
chip_gen: v6e
topology: v6e:2x2x1
jax: 0.10.0
libtpu: 0.0.40
codegen_flags: <defaults>
</compile_context>

<pallas_src>
import functools

import jax
import jax.numpy as jnp
from jax.experimental import pallas as pl
from jax.experimental.pallas import tpu as pltpu

LANE = 128
NCORES = 2  # parallel split (uses both TCs on v7x; benign serial split elsewhere)


def _huber_kernel(pred_ref, target_ref, out_ref, *,
                  delta, rows, block_rows, acc_rows, steps):
    c = pl.program_id(0)   # parallel (core) axis
    j = pl.program_id(1)   # reduction axis

    @pl.when(j == 0)
    def _():
        out_ref[...] = jnp.zeros_like(out_ref)

    # Clamp-form Huber: identical to the masked formulation (incl. |d|==delta).
    d = pred_ref[...].astype(jnp.float32) - target_ref[...].astype(jnp.float32)
    cl = jnp.clip(d, -delta, delta)
    loss = cl * (d - 0.5 * cl)

    # Logical (unclamped) block start; interior blocks need no masking.
    row0 = (c * steps + j) * block_rows
    interior = row0 + block_rows <= rows

    @pl.when(interior)
    def _():
        out_ref[...] += loss.reshape(-1, acc_rows, LANE).sum(axis=0)

    @pl.when(jnp.logical_not(interior))
    def _():
        # Tail (ragged) block: rows past `rows` hold garbage -> mask them.
        # Clamped out-of-range blocks of the parallel split: row0 >= rows, so
        # the whole block masks to zero (the duplicate data contributes 0).
        row_idx = jax.lax.broadcasted_iota(jnp.int32, loss.shape, 0) + row0
        masked = jnp.where(row_idx < rows, loss, 0.0)
        out_ref[...] += masked.reshape(-1, acc_rows, LANE).sum(axis=0)


def huber_loss(pred, target, delta, *, block_rows=8192):
    assert pred.shape == target.shape
    n = pred.size
    itemsize = jnp.dtype(pred.dtype).itemsize

    flat_p = pred.reshape(-1)
    flat_t = target.reshape(-1)

    # Minimal host-side padding to a sublane-aligned row count (8 rows for f32,
    # 16 for bf16, 32 for int8). Zero pad is safe because huber(0) == 0 and the
    # mean divides by the true n. No-op (no copy) for already-aligned sizes.
    sub = max(8, 32 // max(itemsize, 1))
    tile = sub * LANE
    if n % tile:
        pad = tile - n % tile
        flat_p = jnp.pad(flat_p, (0, pad))
        flat_t = jnp.pad(flat_t, (0, pad))

    rows = flat_p.size // LANE
    p2 = flat_p.reshape(rows, LANE)
    t2 = flat_t.reshape(rows, LANE)

    block_rows = min(block_rows, rows)          # both are multiples of `sub`
    num_blocks = pl.cdiv(rows, block_rows)
    ncores = NCORES if num_blocks > 1 else 1    # skip duplicate block on tiny inputs
    steps = pl.cdiv(num_blocks, ncores)
    # Wide accumulator (ILP for the sublane reduce) when block_rows allows it.
    acc_rows = 64 if block_rows % 64 == 0 else sub

    def block_index(c, j):
        # Clamp so no block starts past the end of the array; out-of-range
        # logical blocks are zeroed by the in-kernel masked path.
        return (jnp.minimum(c * steps + j, num_blocks - 1), 0)

    kernel = functools.partial(
        _huber_kernel, delta=float(delta), rows=rows,
        block_rows=block_rows, acc_rows=acc_rows, steps=steps)

    partials = pl.pallas_call(
        kernel,
        out_shape=jax.ShapeDtypeStruct((ncores, acc_rows, LANE), jnp.float32),
        grid=(ncores, steps),
        in_specs=[
            pl.BlockSpec((block_rows, LANE), block_index),
            pl.BlockSpec((block_rows, LANE), block_index),
        ],
        out_specs=pl.BlockSpec((None, acc_rows, LANE), lambda c, j: (c, 0, 0)),
        compiler_params=pltpu.CompilerParams(
            dimension_semantics=("parallel", "arbitrary"),
            vmem_limit_bytes=32 * 1024 * 1024,
        ),
        cost_estimate=pl.CostEstimate(
            flops=6 * n,
            transcendentals=0,
            bytes_accessed=2 * n * itemsize + 4 * ncores * acc_rows * LANE),
    )(p2, t2)

    # Per-core (acc_rows,128) partial sums -> scalar mean (tiny reduction in XLA).
    return jnp.sum(partials) / jnp.float32(n)


def huber_loss_ref(pred, target, delta):
    diff = jnp.abs(pred.astype(jnp.float32) - target.astype(jnp.float32))
    mask = (diff < delta).astype(jnp.float32)
    loss = mask * 0.5 * diff ** 2 + (1 - mask) * (delta * diff - 0.5 * delta ** 2)
    return jnp.mean(loss)


if __name__ == "__main__":
    key = jax.random.PRNGKey(0)
    k1, k2, k3, k4 = jax.random.split(key, 4)
    delta = 1.0

    # Primary case: batch=2, channels=4, spatial=16x16 (aligned, single block).
    shape = (2, 4, 16, 16)
    pred = jax.random.normal(k1, shape, dtype=jnp.float32)
    target = jax.random.normal(k2, shape, dtype=jnp.float32)
    out = jax.block_until_ready(huber_loss(pred, target, delta))
    ref = huber_loss_ref(pred, target, delta)
    assert jnp.allclose(out, ref, atol=1e-5, rtol=1e-5), (out, ref)

    # Secondary case: unaligned size + tiny block override to exercise the
    # padded tail, ragged block, and clamped-duplicate (masked) paths.
    shape2 = (2, 5, 5, 59)  # 2950 elements -> padded to 3072 -> 24 rows
    pred2 = jax.random.normal(k3, shape2, dtype=jnp.float32)
    target2 = jax.random.normal(k4, shape2, dtype=jnp.float32)
    out2 = jax.block_until_ready(huber_loss(pred2, target2, delta, block_rows=8))
    ref2 = huber_loss_ref(pred2, target2, delta)
    assert jnp.allclose(out2, ref2, atol=1e-5, rtol=1e-5), (out2, ref2)

    print("KERNEL_OK")
</pallas_src>

<mosaic_0001>
module attributes {stable_mosaic.version = 11 : i64} {
  func.func @_huber_kernel(%arg0: i32, %arg1: i32, %arg2: memref<16x128xf32, #tpu.memory_space<vmem>>, %arg3: memref<16x128xf32, #tpu.memory_space<vmem>>, %arg4: memref<1x8x128xf32, #tpu.memory_space<vmem>>) attributes {dimension_semantics = [#tpu.dimension_semantics<parallel>, #tpu.dimension_semantics<arbitrary>], iteration_bounds = array<i64: 1, 1>, scalar_prefetch = 0 : i64, scratch_operands = 0 : i64, tpu.core_type = #tpu.core_type<tc>, window_params = [{transform_indices = @transform_0, window_bounds = array<i64: 16, 128>}, {transform_indices = @transform_1, window_bounds = array<i64: 16, 128>}, {transform_indices = @transform_2, window_bounds = array<i64: 1, 8, 128>}]} {
    %c0_i32 = arith.constant 0 : i32
    %0 = arith.cmpi eq, %arg1, %c0_i32 : i32
    %1 = arith.extui %0 : i1 to i32
    %c0_i32_0 = arith.constant 0 : i32
    %2 = arith.cmpi ne, %1, %c0_i32_0 : i32
    scf.if %2 {
      %cst_10 = arith.constant 0.000000e+00 : f32
      %24 = vector.broadcast %cst_10 : f32 to vector<8x128xf32>
      %c0_11 = arith.constant 0 : index
      %c0_12 = arith.constant 0 : index
      %c0_13 = arith.constant 0 : index
      %25 = vector.load %arg4[%c0_11, %c0_12, %c0_13] : memref<1x8x128xf32, #tpu.memory_space<vmem>>, vector<1x8x128xf32>
      %26 = vector.shape_cast %25 : vector<1x8x128xf32> to vector<8x128xf32>
      %27 = vector.shape_cast %24 : vector<8x128xf32> to vector<1x8x128xf32>
      tpu.vector_store %arg4[%c0_11, %c0_12, %c0_13], %27 {strides = array<i32>} : memref<1x8x128xf32, #tpu.memory_space<vmem>>, vector<1x8x128xf32>,
    } else {
    }
    %c0 = arith.constant 0 : index
    %c0_1 = arith.constant 0 : index
    %3 = vector.load %arg2[%c0, %c0_1] : memref<16x128xf32, #tpu.memory_space<vmem>>, vector<16x128xf32>
    %c0_2 = arith.constant 0 : index
    %c0_3 = arith.constant 0 : index
    %4 = vector.load %arg3[%c0_2, %c0_3] : memref<16x128xf32, #tpu.memory_space<vmem>>, vector<16x128xf32>
    %5 = arith.subf %3, %4 : vector<16x128xf32>
    %cst = arith.constant -1.000000e+00 : f32
    %cst_4 = arith.constant 1.000000e+00 : f32
    %6 = vector.broadcast %cst : f32 to vector<16x128xf32>
    %7 = arith.maximumf %6, %5 : vector<16x128xf32>
    %8 = vector.broadcast %cst_4 : f32 to vector<16x128xf32>
    %9 = arith.minimumf %8, %7 : vector<16x128xf32>
    %cst_5 = arith.constant 5.000000e-01 : f32
    %10 = vector.broadcast %cst_5 : f32 to vector<16x128xf32>
    %11 = arith.mulf %10, %9 : vector<16x128xf32>
    %12 = arith.subf %5, %11 : vector<16x128xf32>
    %13 = arith.mulf %9, %12 : vector<16x128xf32>
    %c1_i32 = arith.constant 1 : i32
    %14 = arith.muli %arg0, %c1_i32 : i32
    %15 = arith.addi %14, %arg1 : i32
    %c16_i32 = arith.constant 16 : i32
    %16 = arith.muli %15, %c16_i32 : i32
    %c16_i32_6 = arith.constant 16 : i32
    %17 = arith.addi %16, %c16_i32_6 : i32
    %c16_i32_7 = arith.constant 16 : i32
    %18 = arith.cmpi sle, %17, %c16_i32_7 : i32
    %19 = arith.extui %18 : i1 to i32
    %c0_i32_8 = arith.constant 0 : i32
    %20 = arith.cmpi ne, %19, %c0_i32_8 : i32
    scf.if %20 {
      %c0_10 = arith.constant 0 : index
      %c0_11 = arith.constant 0 : index
      %c0_12 = arith.constant 0 : index
      %24 = vector.load %arg4[%c0_10, %c0_11, %c0_12] : memref<1x8x128xf32, #tpu.memory_space<vmem>>, vector<1x8x128xf32>
      %25 = vector.shape_cast %24 : vector<1x8x128xf32> to vector<8x128xf32>
      %26 = vector.shape_cast %13 : vector<16x128xf32> to vector<2x8x128xf32>
      %cst_13 = arith.constant dense<0.000000e+00> : vector<8x128xf32>
      %27 = vector.multi_reduction <add>, %26, %cst_13 [0] : vector<2x8x128xf32> to vector<8x128xf32>
      %28 = arith.addf %25, %27 : vector<8x128xf32>
      %c0_14 = arith.constant 0 : index
      %c0_15 = arith.constant 0 : index
      %c0_16 = arith.constant 0 : index
      %29 = vector.load %arg4[%c0_14, %c0_15, %c0_16] : memref<1x8x128xf32, #tpu.memory_space<vmem>>, vector<1x8x128xf32>
      %30 = vector.shape_cast %29 : vector<1x8x128xf32> to vector<8x128xf32>
      %31 = vector.shape_cast %28 : vector<8x128xf32> to vector<1x8x128xf32>
      tpu.vector_store %arg4[%c0_14, %c0_15, %c0_16], %31 {strides = array<i32>} : memref<1x8x128xf32, #tpu.memory_space<vmem>>, vector<1x8x128xf32>,
    } else {
    }
    %true = arith.constant true
    %21 = arith.xori %18, %true : i1
    %22 = arith.extui %21 : i1 to i32
    %c0_i32_9 = arith.constant 0 : i32
    %23 = arith.cmpi ne, %22, %c0_i32_9 : i32
    scf.if %23 {
      %24 = tpu.iota {dimensions = array<i32: 0>} : vector<16x128xi32>
      %25 = vector.broadcast %16 : i32 to vector<16x128xi32>
      %26 = arith.addi %24, %25 : vector<16x128xi32>
      %c16_i32_10 = arith.constant 16 : i32
      %27 = vector.broadcast %c16_i32_10 : i32 to vector<16x128xi32>
      %28 = arith.cmpi slt, %26, %27 : vector<16x128xi32>
      %cst_11 = arith.constant 0.000000e+00 : f32
      %29 = vector.broadcast %cst_11 : f32 to vector<16x128xf32>
      %30 = arith.select %28, %13, %29 : vector<16x128xi1>, vector<16x128xf32>
      %c0_12 = arith.constant 0 : index
      %c0_13 = arith.constant 0 : index
      %c0_14 = arith.constant 0 : index
      %31 = vector.load %arg4[%c0_12, %c0_13, %c0_14] : memref<1x8x128xf32, #tpu.memory_space<vmem>>, vector<1x8x128xf32>
      %32 = vector.shape_cast %31 : vector<1x8x128xf32> to vector<8x128xf32>
      %33 = vector.shape_cast %30 : vector<16x128xf32> to vector<2x8x128xf32>
      %cst_15 = arith.constant dense<0.000000e+00> : vector<8x128xf32>
      %34 = vector.multi_reduction <add>, %33, %cst_15 [0] : vector<2x8x128xf32> to vector<8x128xf32>
      %35 = arith.addf %32, %34 : vector<8x128xf32>
      %c0_16 = arith.constant 0 : index
      %c0_17 = arith.constant 0 : index
      %c0_18 = arith.constant 0 : index
      %36 = vector.load %arg4[%c0_16, %c0_17, %c0_18] : memref<1x8x128xf32, #tpu.memory_space<vmem>>, vector<1x8x128xf32>
      %37 = vector.shape_cast %36 : vector<1x8x128xf32> to vector<8x128xf32>
      %38 = vector.shape_cast %35 : vector<8x128xf32> to vector<1x8x128xf32>
      tpu.vector_store %arg4[%c0_16, %c0_17, %c0_18], %38 {strides = array<i32>} : memref<1x8x128xf32, #tpu.memory_space<vmem>>, vector<1x8x128xf32>,
    } else {
    }
    return
  }
  func.func @transform_0(%arg0: i32, %arg1: i32) -> (i32, i32) {
    %c1_i32 = arith.constant 1 : i32
    %0 = arith.muli %arg0, %c1_i32 : i32
    %1 = arith.addi %0, %arg1 : i32
    %c0_i32 = arith.constant 0 : i32
    %2 = arith.minsi %1, %c0_i32 : i32
    %c0_i32_0 = arith.constant 0 : i32
    %c0_i32_1 = arith.constant 0 : i32
    return %2, %c0_i32_0 : i32, i32
  }
  func.func @transform_1(%arg0: i32, %arg1: i32) -> (i32, i32) {
    %c1_i32 = arith.constant 1 : i32
    %0 = arith.muli %arg0, %c1_i32 : i32
    %1 = arith.addi %0, %arg1 : i32
    %c0_i32 = arith.constant 0 : i32
    %2 = arith.minsi %1, %c0_i32 : i32
    %c0_i32_0 = arith.constant 0 : i32
    %c0_i32_1 = arith.constant 0 : i32
    return %2, %c0_i32_0 : i32, i32
  }
  func.func @transform_2(%arg0: i32, %arg1: i32) -> (i32, i32, i32) {
    %c0_i32 = arith.constant 0 : i32
    %c0_i32_0 = arith.constant 0 : i32
    %c0_i32_1 = arith.constant 0 : i32
    return %arg0, %c0_i32, %c0_i32_0 : i32, i32, i32
  }
}

</mosaic_0001>

<llo_original>
// kernel: tpu_custom_call.1
$region0: #{tpu_custom_call.1}
  #allocation0 [shape = 'u32[]', space=smem, size = 0x4, offset = 0x4, fixed_abs, tag = 'smem constant byte address 0x4 - core index']
  #allocation1 [shape = 'u32[144,128]{1,0:T(1,128)}', space=vmem, size = 0x12000, scoped, tag = 'internal scratch']
  %s0 = inlined_call_operand.hbm [shape: f32[16,128], index: 0, kind: input, shape index: {}]
  %s1 = inlined_call_operand.hbm [shape: f32[16,128], index: 1, kind: input, shape index: {}]
  %s2 = inlined_call_operand.hbm [shape: f32[1,8,128], index: 2, kind: output, shape index: {}]
  %s3 = sld [smem:[#allocation0]]
  $region38: #{tpu_custom_call.1} parent=0
    _
  %s5 = ssub.s32 1, %s3
  %s6 = scalar_select 0, %s5, %s3
  $region1: #{tpu_custom_call.1} parent=0
    #allocation2 [shape = 'u8[8192]{0}', space=vmem, size = 0x2000, scoped, tag = 'input window, operand 0, single buffered']
    #allocation3 [shape = 's32[1]{0}', space=sflag, size = 0x4, scoped, tag = 'scoped memory for tpu_custom_call.1']
    #allocation4 [shape = 's32[1]{0}', space=sflag, size = 0x4, scoped, tag = 'scoped memory for tpu_custom_call.1']
    #allocation5 [shape = 'u8[8192]{0}', space=vmem, size = 0x2000, scoped, tag = 'input window, operand 1, single buffered']
    #allocation6 [shape = 's32[1]{0}', space=sflag, size = 0x4, scoped, tag = 'scoped memory for tpu_custom_call.1']
    #allocation7 [shape = 'u8[4096]{0}', space=vmem, size = 0x1000, scoped, tag = 'output window, operand 0, single buffered']
    %7 = vsyncpa [#allocation3], 0
    %8 = vsyncpa [#allocation6], 0
    %9 = vsyncpa [#allocation4], 0
    // Predicated region
    $region2: #{tpu_custom_call.1} parent=1 // pred_check
      _
    $region3: #{tpu_custom_call.1} parent=1 // pred_check_branch
      %11 = sbr.rel (0) target = $region5
    $region4: #{tpu_custom_call.1} parent=1 // pred_region
      %s12 = sadd.s32 0, 0
      %p13 = scmp.lt.s32.totalorder %s12, 0
      %s14 = scalar_select %p13, %s12, 0
      %s15 = smul.u32 2, %s14
      %s17 = ssub.s32 256, 256
      %18 = vsyncadd [#allocation3], %s17
      %s19 = smul.addr %s15, 128
      %s20 = scalar_lea.hbm %s0, %s19
      %s21 = sshll.u32 [#allocation2], 4
      %s22 = int_to_ptr.vmem [resolvable:$true] %s21
      %27 = dma.hbm_to_vmem [thread:$0]  %s20, 256, %s22, [#allocation3], 128, 128, 8
    $region5: #{tpu_custom_call.1} parent=1 // pred_fallthru
      _
    // Predicated region
    $region6: #{tpu_custom_call.1} parent=1 // pred_check
      _
    $region7: #{tpu_custom_call.1} parent=1 // pred_check_branch
      %29 = sbr.rel (0) target = $region9
    $region8: #{tpu_custom_call.1} parent=1 // pred_region
      %s30 = sadd.s32 0, 0
      %p31 = scmp.lt.s32.totalorder %s30, 0
      %s32 = scalar_select %p31, %s30, 0
      %s33 = smul.u32 2, %s32
      %s35 = ssub.s32 256, 256
      %36 = vsyncadd [#allocation6], %s35
      %s37 = smul.addr %s33, 128
      %s38 = scalar_lea.hbm %s1, %s37
      %s39 = sshll.u32 [#allocation5], 4
      %s40 = int_to_ptr.vmem [resolvable:$true] %s39
      %45 = dma.hbm_to_vmem [thread:$0]  %s38, 256, %s40, [#allocation6], 128, 128, 8
    $region9: #{tpu_custom_call.1} parent=1 // pred_fallthru
      _
    // Predicated region
    $region10: #{tpu_custom_call.1} parent=1 // pred_check
      _
    $region11: #{tpu_custom_call.1} parent=1 // pred_check_branch
      %47 = sbr.rel (0) target = $region13
    $region12: #{tpu_custom_call.1} parent=1 // pred_region
      %48 = dma.done [#allocation3], 256
    $region13: #{tpu_custom_call.1} parent=1 // pred_fallthru
      _
    // Predicated region
    $region14: #{tpu_custom_call.1} parent=1 // pred_check
      _
    $region15: #{tpu_custom_call.1} parent=1 // pred_check_branch
      %50 = sbr.rel (0) target = $region17
    $region16: #{tpu_custom_call.1} parent=1 // pred_region
      %51 = dma.done [#allocation6], 256
    $region17: #{tpu_custom_call.1} parent=1 // pred_fallthru
      _
    %s52 = sadd.s32 0, 0
    %p53 = scmp.lt.s32.totalorder %s52, 0
    %s54 = scalar_select %p53, %s52, 0
    %s55 = smul.u32 2, %s54
    %s56 = sadd.s32 0, 0
    %p57 = scmp.lt.s32.totalorder %s56, 0
    %s58 = scalar_select %p57, %s56, 0
    %s59 = smul.u32 2, %s58
    %p60 = scmp.eq.s32.totalorder 0, 0
    // Predicated region
    $region18: #{tpu_custom_call.1} parent=1 // pred_check
      %p61 = pneg %p60
    $region19: #{tpu_custom_call.1} parent=1 // pred_check_branch
      %63 = sbr.rel (%p61) target = $region21
    $region20: #{tpu_custom_call.1} parent=1 // pred_region
      %64 = vst [vmem:[#allocation7] sm:$0xff] 0.0
    $region21: #{tpu_custom_call.1} parent=1 // pred_fallthru
      _
    %v65 = vld [vmem:[#allocation2] sm:$0xff]
    %v66 = vld [vmem:[#allocation2 + $0x8] sm:$0xff]
    %v67 = vld [vmem:[#allocation5] sm:$0xff]
    %v68 = vld [vmem:[#allocation5 + $0x8] sm:$0xff]
    %v69 = vsub.f32 %v65, %v67
    %v70 = vsub.f32 %v66, %v68
    %v71 = vmax.f32 %v69, -1.0
    %v72 = vmax.f32 %v70, -1.0
    %v73 = vmin.f32 %v71, 1.0
    %v74 = vmin.f32 %v72, 1.0
    %v75 = vmul.f32 %v73, 0.5
    %v76 = vmul.f32 %v74, 0.5
    %v77 = vsub.f32 %v69, %v75
    %v78 = vsub.f32 %v70, %v76
    %v79 = vmul.f32 %v73, %v77
    %v80 = vmul.f32 %v74, %v78
    %s81 = sadd.s32 0, 0
    %s82 = smul.u32 %s81, 16
    %s83 = sadd.s32 %s82, 16
    %p84 = scmp.le.s32.totalorder %s83, 16
    // Predicated region
    $region22: #{tpu_custom_call.1} parent=1 // pred_check
      %p85 = pneg %p84
    $region23: #{tpu_custom_call.1} parent=1 // pred_check_branch
      %87 = sbr.rel (%p85) target = $region25
    $region24: #{tpu_custom_call.1} parent=1 // pred_region
      %v88 = vld [vmem:[#allocation7] sm:$0xff]
      %v89 = vadd.f32 %v79, %v80
      %v90 = vadd.f32 %v88, %v89
      %91 = vst [vmem:[#allocation7] sm:$0xff] %v90
    $region25: #{tpu_custom_call.1} parent=1 // pred_fallthru
      _
    %p92 = scmp.gt.s32.totalorder %s83, 16
    // Predicated region
    $region26: #{tpu_custom_call.1} parent=1 // pred_check
      %p93 = pneg %p92
    $region27: #{tpu_custom_call.1} parent=1 // pred_check_branch
      %95 = sbr.rel (%p93) target = $region29
    $region28: #{tpu_custom_call.1} parent=1 // pred_region
      %v96 = vlaneseq
      %v97 = vshrl.u32 %v96, 7
      %v98 = vadd.s32 %v97, 8
      %v99 = vstv %s82
      %v100 = vadd.s32 %v97, %v99
      %v101 = vadd.s32 %v98, %v99
      %vm102 = vcmp.lt.s32.totalorder %v100, 16
      %vm103 = vcmp.lt.s32.totalorder %v101, 16
      %v104 = vsel %vm102, %v79, 0.0
      %v105 = vsel %vm103, %v80, 0.0
      %v106 = vld [vmem:[#allocation7] sm:$0xff]
      %v107 = vadd.f32 %v104, %v105
      %v108 = vadd.f32 %v106, %v107
      %109 = vst [vmem:[#allocation7] sm:$0xff] %v108
    $region29: #{tpu_custom_call.1} parent=1 // pred_fallthru
      _
    // Predicated region
    $region30: #{tpu_custom_call.1} parent=1 // pred_check
      _
    $region31: #{tpu_custom_call.1} parent=1 // pred_check_branch
      %111 = sbr.rel (0) target = $region33
    $region32: #{tpu_custom_call.1} parent=1 // pred_region
      %s113 = ssub.s32 128, 128
      %114 = vsyncadd [#allocation4], %s113
      %s116 = sshll.u32 [#allocation7], 4
      %s117 = int_to_ptr.vmem [resolvable:$true] %s116
      %119 = dma.vmem_to_hbm [thread:$0]  %s117, 128, %s2, [#allocation4]
    $region33: #{tpu_custom_call.1} parent=1 // pred_fallthru
      _
    // Predicated region
    $region34: #{tpu_custom_call.1} parent=1 // pred_check
      _
    $region35: #{tpu_custom_call.1} parent=1 // pred_check_branch
      %121 = sbr.rel (0) target = $region37
    $region36: #{tpu_custom_call.1} parent=1 // pred_region
      %122 = dma.done [#allocation4], 128
    $region37: #{tpu_custom_call.1} parent=1 // pred_fallthru
      _
    %123 = vsyncpa [#allocation3], 1
    %124 = vsyncpa [#allocation6], 1
    %125 = vsyncpa [#allocation4], 1

</llo_original>
